<compile_context>
chip_gen: v5e
topology: v5e:2x2
jax: 0.10.0
libtpu: 0.0.40
codegen_flags: <defaults>
</compile_context>

<pallas_src>
import jax
import jax.numpy as jnp
from jax.experimental import pallas as pl
from jax.experimental.pallas import tpu as pltpu

_LANE = 128
_SUBLANE = 8

_M_TILE_PREF = (512, 256, 128)          # sublane-side tile preferences
_N_TILE_PREF = (1024, 512, 256, 128)    # lane-dense output tiles
_K_TILE_PREF = (1024, 512, 256, 128)    # reduction tile


def _round_up(x, m):
    return ((x + m - 1) // m) * m


def _choose_tile_and_pad(dim, preferred, align):
    """Pick a tile size and the padded dim it divides.

    Prefers (in order): a preferred tile that already divides the aligned dim
    (zero padding); otherwise the largest preferred tile <= the aligned dim
    (pad up to a multiple of it); otherwise the aligned dim itself (small dims,
    still (8,128)-legal because of `align`).  Never falls back to an unbounded
    full-extent block.
    """
    d = _round_up(dim, align)
    for t in preferred:
        if d % t == 0:
            return t, d
    for t in preferred:
        if t <= d:
            return t, _round_up(d, t)
    return d, d


def _vmem_limit_bytes():
    """~3/4 of physical VMEM (48 MiB on v7x, 96 MiB on v5e/v6e), safe fallback."""
    try:
        info = pltpu.get_tpu_info()
        cap = getattr(info, "vmem_capacity_bytes", None)
        if cap:
            return int(min(96 * 1024 * 1024, (cap * 3) // 4))
    except Exception:
        pass
    return 48 * 1024 * 1024


def _linear_bias_kernel(x_ref, w_ref, b_ref, o_ref, acc_ref):
    # x_ref: (tm, tk) bf16 activations tile
    # w_ref: (tk, tn) bf16 pre-transposed weight tile (canonical contraction)
    # b_ref: (1, tn)  f32 bias tile
    # o_ref: (tm, tn) output tile
    # acc_ref: (tm, tn) f32 accumulator, resident across the K grid axis
    k = pl.program_id(2)

    @pl.when(k == 0)
    def _init():
        acc_ref[...] = jnp.zeros_like(acc_ref)

    acc_ref[...] += jnp.dot(
        x_ref[...], w_ref[...], preferred_element_type=jnp.float32
    )

    @pl.when(k == pl.num_programs(2) - 1)
    def _finish():
        o_ref[...] = (acc_ref[...] + b_ref[...].astype(jnp.float32)).astype(o_ref.dtype)


def _linear_nobias_kernel(x_ref, w_ref, o_ref, acc_ref):
    k = pl.program_id(2)

    @pl.when(k == 0)
    def _init():
        acc_ref[...] = jnp.zeros_like(acc_ref)

    acc_ref[...] += jnp.dot(
        x_ref[...], w_ref[...], preferred_element_type=jnp.float32
    )

    @pl.when(k == pl.num_programs(2) - 1)
    def _finish():
        o_ref[...] = acc_ref[...].astype(o_ref.dtype)


def linear_pallas(x, weight_t, bias_padded, *, out_features, tk, tn,
                  compute_dtype=jnp.bfloat16, out_dtype=None):
    """x @ W.T + b where `weight_t` is the pre-transposed, pre-padded (K_pad, N_pad)
    weight in `compute_dtype` and `bias_padded` is (1, N_pad) f32 or None."""
    *lead, k_dim = x.shape
    k_pad, n_pad = weight_t.shape
    assert k_dim <= k_pad and k_pad % tk == 0 and n_pad % tn == 0
    if out_dtype is None:
        out_dtype = x.dtype

    m_dim = 1
    for d in lead:
        m_dim *= d

    tm, m_pad = _choose_tile_and_pad(m_dim, _M_TILE_PREF, _SUBLANE)

    # v7x megacore: ensure the parallel (M, N) grid has >= 2 blocks so both
    # TensorCores get work (harmless no-op on single-TC v5e/v6e).
    if (m_pad // tm) * (n_pad // tn) < 2 and tn >= 2 * _LANE:
        tn //= 2

    x2 = x.reshape(m_dim, k_dim).astype(compute_dtype)
    if m_pad != m_dim or k_pad != k_dim:
        x2 = jnp.pad(x2, ((0, m_pad - m_dim), (0, k_pad - k_dim)))

    grid = (m_pad // tm, n_pad // tn, k_pad // tk)

    if bias_padded is not None:
        kernel = _linear_bias_kernel
        in_specs = [
            pl.BlockSpec((tm, tk), lambda i, j, k: (i, k)),   # x tile
            pl.BlockSpec((tk, tn), lambda i, j, k: (k, j)),   # weight tile (K, N)
            pl.BlockSpec((1, tn), lambda i, j, k: (0, j)),    # bias tile
        ]
        operands = (x2, weight_t, bias_padded)
    else:
        kernel = _linear_nobias_kernel
        in_specs = [
            pl.BlockSpec((tm, tk), lambda i, j, k: (i, k)),
            pl.BlockSpec((tk, tn), lambda i, j, k: (k, j)),
        ]
        operands = (x2, weight_t)

    out2 = pl.pallas_call(
        kernel,
        out_shape=jax.ShapeDtypeStruct((m_pad, n_pad), out_dtype),
        grid_spec=pltpu.PrefetchScalarGridSpec(
            num_scalar_prefetch=0,
            grid=grid,
            in_specs=in_specs,
            out_specs=pl.BlockSpec((tm, tn), lambda i, j, k: (i, j)),
            scratch_shapes=[pltpu.VMEM((tm, tn), jnp.float32)],
        ),
        compiler_params=pltpu.CompilerParams(
            dimension_semantics=("parallel", "parallel", "arbitrary"),
            vmem_limit_bytes=_vmem_limit_bytes(),
        ),
    )(*operands)

    if m_pad != m_dim or n_pad != out_features:
        out2 = out2[:m_dim, :out_features]
    return out2.reshape(*lead, out_features)


class LogQuantizedLinearPallas:
    """JAX/Pallas port of LogQuantizedLinear (default, non-quantized forward).

    forward(x) = x @ W.T + b, computed on the MXU in bf16 with f32 accumulation.
    The LogQuantizedOperator buffers are kept and (optionally, in training mode)
    updated with the same EMA rule; they do not affect the default forward output.
    """

    def __init__(self, in_features, out_features, bias=True,
                 eps=1e-8, momentum=0.1, key=None, compute_dtype=jnp.bfloat16):
        if key is None:
            key = jax.random.PRNGKey(0)
        kw, kb = jax.random.split(key)
        bound = 1.0 / (in_features ** 0.5)          # nn.Linear default init range
        self.in_features = in_features
        self.out_features = out_features
        self.compute_dtype = compute_dtype

        self.weight = jax.random.uniform(
            kw, (out_features, in_features), jnp.float32, -bound, bound)
        self.bias = (
            jax.random.uniform(kb, (out_features,), jnp.float32, -bound, bound)
            if bias else None)

        # One-time plumbing (outside the per-call hot path): choose K/N tiles,
        # pad to tile multiples, transpose to (K, N), cast to the MXU dtype.
        self._tk, self._k_pad = _choose_tile_and_pad(in_features, _K_TILE_PREF, _LANE)
        self._tn, self._n_pad = _choose_tile_and_pad(out_features, _N_TILE_PREF, _LANE)
        w_t = jnp.transpose(self.weight)                       # (K, N)
        w_t = jnp.pad(w_t, ((0, self._k_pad - in_features),
                            (0, self._n_pad - out_features)))
        self.weight_t = w_t.astype(compute_dtype)
        if bias:
            self.bias_padded = jnp.pad(
                self.bias, (0, self._n_pad - out_features)
            ).reshape(1, self._n_pad).astype(jnp.float32)
        else:
            self.bias_padded = None

        # buffers from LogQuantizedOperator.__init__
        self.eps = eps
        self.momentum = momentum
        self.running_max_abs = jnp.ones((1,), dtype=jnp.float32) * eps
        self.num_batches_tracked = jnp.array(0, dtype=jnp.int32)
        self.activation_quantization = False
        self.training = False   # inference by default; stats update only in training

    def _update_max_abs_stats(self, output):
        # TODO(synk): this mutates Python attributes; under jax.jit it is not a
        # stateful buffer update (parity-only, matches eval-mode PyTorch forward).
        max_abs = jnp.maximum(jnp.max(jnp.abs(output)), self.eps)
        new_val = jnp.where(
            self.num_batches_tracked == 0,
            max_abs,
            max_abs * self.momentum + self.running_max_abs[0] * (1.0 - self.momentum),
        )
        self.running_max_abs = jnp.reshape(new_val, (1,))
        self.num_batches_tracked = self.num_batches_tracked + 1

    def __call__(self, x):
        # TODO(synk): _activation_quantized_forward (LogQuantizedTensor input
        # path with log quantize/dequantize + residual q2) is not ported.
        assert not self.activation_quantization, "quantized-activation path not ported"
        out = linear_pallas(
            x, self.weight_t, self.bias_padded,
            out_features=self.out_features,
            tk=self._tk, tn=self._tn,
            compute_dtype=self.compute_dtype,
            out_dtype=x.dtype,
        )
        if self.training:
            self._update_max_abs_stats(out)
        return out


if __name__ == "__main__":
    key = jax.random.PRNGKey(0)
    kx, kmod = jax.random.split(key)

    batch, seq, in_features, out_features = 2, 8, 128, 256
    x = jax.random.normal(kx, (batch, seq, in_features), dtype=jnp.float32)

    module = LogQuantizedLinearPallas(in_features, out_features, bias=True, key=kmod)
    out = jax.block_until_ready(module(x))
    assert out.shape == (batch, seq, out_features), out.shape

    # Reference 1: same datapath as the kernel (bf16 inputs, f32 accumulation).
    x_bf = x.astype(jnp.bfloat16)
    w_bf = module.weight.astype(jnp.bfloat16)
    ref_bf = jnp.einsum("bsk,nk->bsn", x_bf, w_bf,
                        preferred_element_type=jnp.float32) + module.bias
    err_bf = float(jnp.max(jnp.abs(out.astype(jnp.float32) - ref_bf)))
    assert jnp.allclose(out.astype(jnp.float32), ref_bf, atol=1e-2, rtol=1e-2), (
        f"bf16-path mismatch, max abs err {err_bf}")

    # Reference 2: full-f32 F.linear semantics (deliberately loose tolerance —
    # the kernel intentionally runs the MXU in bf16 with f32 accumulation).
    ref_f32 = jnp.einsum("bsk,nk->bsn", x, module.weight) + module.bias
    err_f32 = float(jnp.max(jnp.abs(out - ref_f32)))
    assert jnp.allclose(out, ref_f32, atol=1e-1, rtol=1e-1), (
        f"f32-reference mismatch, max abs err {err_f32}")

    print("KERNEL_OK")
</pallas_src>

<mosaic_0001>
module attributes {stable_mosaic.version = 11 : i64} {
  func.func @_linear_bias_kernel(%arg0: i32, %arg1: i32, %arg2: i32, %arg3: memref<16x128xbf16, #tpu.memory_space<vmem>>, %arg4: memref<128x128xbf16, #tpu.memory_space<vmem>>, %arg5: memref<1x128xf32, #tpu.memory_space<vmem>>, %arg6: memref<16x128xf32, #tpu.memory_space<vmem>>, %arg7: memref<16x128xf32, #tpu.memory_space<vmem>>) attributes {dimension_semantics = [#tpu.dimension_semantics<parallel>, #tpu.dimension_semantics<parallel>, #tpu.dimension_semantics<arbitrary>], iteration_bounds = array<i64: 1, 2, 1>, scalar_prefetch = 0 : i64, scratch_operands = 1 : i64, tpu.core_type = #tpu.core_type<tc>, window_params = [{transform_indices = @transform_0, window_bounds = array<i64: 16, 128>}, {transform_indices = @transform_1, window_bounds = array<i64: 128, 128>}, {transform_indices = @transform_2, window_bounds = array<i64: 1, 128>}, {transform_indices = @transform_3, window_bounds = array<i64: 16, 128>}]} {
    %c0_i32 = arith.constant 0 : i32
    %0 = arith.cmpi eq, %arg2, %c0_i32 : i32
    %1 = arith.extui %0 : i1 to i32
    %c0_i32_0 = arith.constant 0 : i32
    %2 = arith.cmpi ne, %1, %c0_i32_0 : i32
    scf.if %2 {
      %cst_10 = arith.constant 0.000000e+00 : f32
      %12 = vector.broadcast %cst_10 : f32 to vector<16x128xf32>
      %c0_11 = arith.constant 0 : index
      %c0_12 = arith.constant 0 : index
      %13 = vector.load %arg7[%c0_11, %c0_12] : memref<16x128xf32, #tpu.memory_space<vmem>>, vector<16x128xf32>
      tpu.vector_store %arg7[%c0_11, %c0_12], %12 {strides = array<i32>} : memref<16x128xf32, #tpu.memory_space<vmem>>, vector<16x128xf32>,
    } else {
    }
    %c0 = arith.constant 0 : index
    %c0_1 = arith.constant 0 : index
    %3 = vector.load %arg7[%c0, %c0_1] : memref<16x128xf32, #tpu.memory_space<vmem>>, vector<16x128xf32>
    %c0_2 = arith.constant 0 : index
    %c0_3 = arith.constant 0 : index
    %4 = vector.load %arg3[%c0_2, %c0_3] : memref<16x128xbf16, #tpu.memory_space<vmem>>, vector<16x128xbf16>
    %c0_4 = arith.constant 0 : index
    %c0_5 = arith.constant 0 : index
    %5 = vector.load %arg4[%c0_4, %c0_5] : memref<128x128xbf16, #tpu.memory_space<vmem>>, vector<128x128xbf16>
    %cst = arith.constant dense<0.000000e+00> : vector<16x128xf32>
    %6 = tpu.matmul %4, %5, %cst {dimension_numbers = #tpu.dot_dimension_numbers<[1], [0], [0], [1], [0, 0, 1, 1], [], []>} : vector<16x128xbf16>, vector<128x128xbf16>, vector<16x128xf32> -> vector<16x128xf32>
    %7 = arith.addf %3, %6 : vector<16x128xf32>
    %c0_6 = arith.constant 0 : index
    %c0_7 = arith.constant 0 : index
    %8 = vector.load %arg7[%c0_6, %c0_7] : memref<16x128xf32, #tpu.memory_space<vmem>>, vector<16x128xf32>
    tpu.vector_store %arg7[%c0_6, %c0_7], %7 {strides = array<i32>} : memref<16x128xf32, #tpu.memory_space<vmem>>, vector<16x128xf32>,
    %c0_i32_8 = arith.constant 0 : i32
    %9 = arith.cmpi eq, %arg2, %c0_i32_8 : i32
    %10 = arith.extui %9 : i1 to i32
    %c0_i32_9 = arith.constant 0 : i32
    %11 = arith.cmpi ne, %10, %c0_i32_9 : i32
    scf.if %11 {
      %c0_10 = arith.constant 0 : index
      %c0_11 = arith.constant 0 : index
      %12 = vector.load %arg7[%c0_10, %c0_11] : memref<16x128xf32, #tpu.memory_space<vmem>>, vector<16x128xf32>
      %c0_12 = arith.constant 0 : index
      %c0_13 = arith.constant 0 : index
      %13 = vector.load %arg5[%c0_12, %c0_13] : memref<1x128xf32, #tpu.memory_space<vmem>>, vector<1x128xf32>
      %14 = vector.broadcast %13 : vector<1x128xf32> to vector<16x128xf32>
      %15 = arith.addf %12, %14 : vector<16x128xf32>
      %c0_14 = arith.constant 0 : index
      %c0_15 = arith.constant 0 : index
      %16 = vector.load %arg6[%c0_14, %c0_15] : memref<16x128xf32, #tpu.memory_space<vmem>>, vector<16x128xf32>
      tpu.vector_store %arg6[%c0_14, %c0_15], %15 {strides = array<i32>} : memref<16x128xf32, #tpu.memory_space<vmem>>, vector<16x128xf32>,
    } else {
    }
    return
  }
  func.func @transform_0(%arg0: i32, %arg1: i32, %arg2: i32) -> (i32, i32) {
    %c0_i32 = arith.constant 0 : i32
    return %arg0, %arg2 : i32, i32
  }
  func.func @transform_1(%arg0: i32, %arg1: i32, %arg2: i32) -> (i32, i32) {
    %c0_i32 = arith.constant 0 : i32
    return %arg2, %arg1 : i32, i32
  }
  func.func @transform_2(%arg0: i32, %arg1: i32, %arg2: i32) -> (i32, i32) {
    %c0_i32 = arith.constant 0 : i32
    %c0_i32_0 = arith.constant 0 : i32
    return %c0_i32, %arg1 : i32, i32
  }
  func.func @transform_3(%arg0: i32, %arg1: i32, %arg2: i32) -> (i32, i32) {
    %c0_i32 = arith.constant 0 : i32
    return %arg0, %arg1 : i32, i32
  }
}

</mosaic_0001>

<llo_original>
// kernel: tpu_custom_call.1
$region0: #{tpu_custom_call.1}
  #allocation0 [shape = 'u32[]', space=smem, size = 0x4, offset = 0x4, fixed_abs, tag = 'smem constant byte address 0x4 - core index']
  #allocation1 [shape = 'u32[72,128]{1,0:T(1,128)}', space=vmem, size = 0x9000, scoped, tag = 'internal scratch']
  #allocation2 [shape = 'f32[16,128]{1,0:T(8,128)}', space=vmem, size = 0x2000, scoped, tag = 'scratch operand']
  %s0 = inlined_call_operand.hbm [shape: bf16[16,128], index: 0, kind: input, shape index: {}]
  %s1 = inlined_call_operand.hbm [shape: bf16[128,256], index: 1, kind: input, shape index: {}]
  %s2 = inlined_call_operand.hbm [shape: f32[1,256], index: 2, kind: input, shape index: {}]
  %s3 = inlined_call_operand.hbm [shape: f32[16,256], index: 3, kind: output, shape index: {}]
  %s4 = sld [smem:[#allocation0]]
  $region65: #{tpu_custom_call.1} parent=0
    _
  %s6 = ssub.s32 1, %s4
  %s7 = scalar_select 0, %s6, %s4
  $region1: #{tpu_custom_call.1} parent=0
    #allocation3 [shape = 'u8[4096]{0}', space=vmem, size = 0x1000, scoped, tag = 'input window, operand 0, single buffered']
    #allocation4 [shape = 's32[2]{0}', space=sflag, size = 0x8, scoped, tag = 'scoped memory for tpu_custom_call.1']
    #allocation5 [shape = 's32[2]{0}', space=sflag, size = 0x8, scoped, tag = 'scoped memory for tpu_custom_call.1']
    #allocation6 [shape = 'u8[65536]{0}', space=vmem, size = 0x10000, scoped, tag = 'input window, operand 1']
    #allocation7 [shape = 's32[2]{0}', space=sflag, size = 0x8, scoped, tag = 'scoped memory for tpu_custom_call.1']
    #allocation8 [shape = 'u8[1024]{0}', space=vmem, size = 0x400, scoped, tag = 'input window, operand 2']
    #allocation9 [shape = 'u8[16384]{0}', space=vmem, size = 0x4000, scoped, tag = 'output window, operand 0']
    %8 = vsyncpa [#allocation4], 0
    %9 = vsyncpa [#allocation7], 0
    %s10 = scalar_lea.sflag [#allocation7], 1
    %11 = vsyncpa %s10, 0
    %12 = vsyncpa [#allocation5], 0
    %s13 = scalar_lea.sflag [#allocation5], 1
    %14 = vsyncpa %s13, 0
    loop: start=0, step=1, limit=4
    $region2: #{tpu_custom_call.1} parent=1 // loop_pre_header
      _
    $region3: #{tpu_custom_call.1} parent=1 // loop_header
      %s16 = sphi 0, %s20
      %p17 = scmp.ge.s32.totalorder %s16, 4
      %s23 = sphi 0, %s42
      %s24 = sphi 0, %s38
      %s25 = sphi 0, %s34
      %s26 = sphi 0, %s23
      %s27 = sphi 0, %s24
      %s28 = sphi 0, %s25
      %s29 = sphi 0, %s26
      %s30 = sphi 0, %s27
      %s31 = sphi 0, %s28
      %s47 = sphi 0, %s49
      %s50 = sphi 0, %s47
      %s51 = sphi 0, %s50
      %s67 = sphi 0, %s51
      %s75 = sphi 0, %s77
      %s78 = sphi 0, %s75
      %s79 = sphi 0, %s78
      %s95 = sphi 0, %s79
      %s101 = sphi 0, %s103
      %s104 = sphi 0, %s101
      %s105 = sphi 0, %s104
      %s121 = sphi 0, %s105
      %s129 = sphi 0, %s131
      %s132 = sphi 0, %s129
      %s133 = sphi 0, %s132
      %s149 = sphi 0, %s133
    $region4: #{tpu_custom_call.1} parent=1 // loop_header_branch
      %19 = sbr.rel (%p17) target = $region8
    $region5: #{tpu_custom_call.1} parent=1 // loop_body
      %s21 = ssub.s32 %s16, 1
      %s22 = ssub.s32 %s16, 2
      %s32 = sadd.s32 1, %s25
      %p33 = scmp.ge.s32.totalorder %s32, 1
      %s34 = scalar_select %p33, 0, %s32
      %s35 = sadd.s32 1, %s24
      %s36 = scalar_select %p33, %s35, %s24
      %p37 = scmp.ge.s32.totalorder %s36, 2
      %s38 = scalar_select %p37, 0, %s36
      %s39 = sadd.s32 1, %s23
      %s40 = scalar_select %p37, %s39, %s23
      %p41 = scmp.ge.s32.totalorder %s40, 1
      %s42 = scalar_select %p41, 0, %s40
      %s43 = ssub.s32 %s23, %s42
      %s44 = ssub.s32 %s25, %s34
      %s45 = sor.u32 %s43, %s44
      %p46 = scmp.eq.s32.totalorder %s45, 0
      %s48 = sadd.s32 %s47, 1
      %s49 = scalar_select %p46, %s47, %s48
      %p52 = pneg %p46
      %p53 = scmp.eq.s32.totalorder %s16, 1
      %p54 = por %p52, %p53
      %p55 = scmp.ne.s32.totalorder %s47, %s50
      %p56 = scmp.eq.s32.totalorder %s16, 0
      %p57 = por %p55, %p56
      %p58 = scmp.ne.s32.totalorder %s47, %s50
      %p59 = scmp.eq.s32.totalorder %s21, 1
      %p60 = por %p58, %p59
      %p61 = scmp.ne.s32.totalorder %s50, %s51
      %p62 = scmp.eq.s32.totalorder %s21, 0
      %p63 = por %p61, %p62
      %p64 = scmp.ne.s32.totalorder %s50, %s51
      %p65 = scmp.eq.s32.totalorder %s22, 1
      %p66 = por %p64, %p65
      %p68 = scmp.ne.s32.totalorder %s51, %s67
      %p69 = scmp.eq.s32.totalorder %s22, 0
      %p70 = por %p68, %p69
      %s71 = ssub.s32 %s25, %s34
      %s72 = ssub.s32 %s24, %s38
      %s73 = sor.u32 %s71, %s72
      %p74 = scmp.eq.s32.totalorder %s73, 0
      %s76 = sadd.s32 %s75, 1
      %s77 = scalar_select %p74, %s75, %s76
      %p80 = pneg %p74
      %p81 = scmp.eq.s32.totalorder %s16, 1
      %p82 = por %p80, %p81
      %p83 = scmp.ne.s32.totalorder %s75, %s78
      %p84 = scmp.eq.s32.totalorder %s16, 0
      %p85 = por %p83, %p84
      %p86 = scmp.ne.s32.totalorder %s75, %s78
      %p87 = scmp.eq.s32.totalorder %s21, 1
      %p88 = por %p86, %p87
      %p89 = scmp.ne.s32.totalorder %s78, %s79
      %p90 = scmp.eq.s32.totalorder %s21, 0
      %p91 = por %p89, %p90
      %p92 = scmp.ne.s32.totalorder %s78, %s79
      %p93 = scmp.eq.s32.totalorder %s22, 1
      %p94 = por %p92, %p93
      %p96 = scmp.ne.s32.totalorder %s79, %s95
      %p97 = scmp.eq.s32.totalorder %s22, 0
      %p98 = por %p96, %p97
      %s99 = ssub.s32 %s24, %s38
      %p100 = scmp.eq.s32.totalorder %s99, 0
      %s102 = sadd.s32 %s101, 1
      %s103 = scalar_select %p100, %s101, %s102
      %p106 = pneg %p100
      %p107 = scmp.eq.s32.totalorder %s16, 1
      %p108 = por %p106, %p107
      %p109 = scmp.ne.s32.totalorder %s101, %s104
      %p110 = scmp.eq.s32.totalorder %s16, 0
      %p111 = por %p109, %p110
      %p112 = scmp.ne.s32.totalorder %s101, %s104
      %p113 = scmp.eq.s32.totalorder %s21, 1
      %p114 = por %p112, %p113
      %p115 = scmp.ne.s32.totalorder %s104, %s105
      %p116 = scmp.eq.s32.totalorder %s21, 0
      %p117 = por %p115, %p116
      %p118 = scmp.ne.s32.totalorder %s104, %s105
      %p119 = scmp.eq.s32.totalorder %s22, 1
      %p120 = por %p118, %p119
      %p122 = scmp.ne.s32.totalorder %s105, %s121
      %p123 = scmp.eq.s32.totalorder %s22, 0
      %p124 = por %p122, %p123
      %s125 = ssub.s32 %s23, %s42
      %s126 = ssub.s32 %s24, %s38
      %s127 = sor.u32 %s125, %s126
      %p128 = scmp.eq.s32.totalorder %s127, 0
      %s130 = sadd.s32 %s129, 1
      %s131 = scalar_select %p128, %s129, %s130
      %p134 = pneg %p128
      %p135 = scmp.eq.s32.totalorder %s16, 1
      %p136 = por %p134, %p135
      %p137 = scmp.ne.s32.totalorder %s129, %s132
      %p138 = scmp.eq.s32.totalorder %s16, 0
      %p139 = por %p137, %p138
      %p140 = scmp.ne.s32.totalorder %s129, %s132
      %p141 = scmp.eq.s32.totalorder %s21, 1
      %p142 = por %p140, %p141
      %p143 = scmp.ne.s32.totalorder %s132, %s133
      %p144 = scmp.eq.s32.totalorder %s21, 0
      %p145 = por %p143, %p144
      %p146 = scmp.ne.s32.totalorder %s132, %s133
      %p147 = scmp.eq.s32.totalorder %s22, 1
      %p148 = por %p146, %p147
      %p150 = scmp.ne.s32.totalorder %s133, %s149
      %p151 = scmp.eq.s32.totalorder %s22, 0
      %p152 = por %p150, %p151
      %p153 = scmp.le.s32.totalorder 1, %s16
      %p154 = scmp.lt.s32.totalorder %s16, 3
      %p155 = pnand %p153, %p154
      %p156 = pneg %p155
      // Predicated region
      $region9: #{tpu_custom_call.1} parent=5 // pred_check
        _
      $region10: #{tpu_custom_call.1} parent=5 // pred_check_branch
        %158 = sbr.rel (%p155) target = $region12
      $region11: #{tpu_custom_call.1} parent=5 // pred_region
        %s159 = ssub.s32 %s16, 1
        // Predicated region
        $region13: #{tpu_custom_call.1} parent=11 // pred_check
          %p160 = pneg %p63
        $region14: #{tpu_custom_call.1} parent=11 // pred_check_branch
          %162 = sbr.rel (%p160) target = $region16
        $region15: #{tpu_custom_call.1} parent=11 // pred_region
          %s163 = smul.u32 2, %s26
          %165 = vsyncadd [#allocation4], 0
          %s166 = sadd.s32 %s28, %s163
          %s167 = smul.addr %s166, 4
          %s168 = scalar_lea.hbm %s0, %s167
          %s169 = sshll.u32 %s168, 4
          %s170 = int_to_ptr.hbm [resolvable:$true] %s169
          %s171 = sshll.u32 [#allocation3], 4
          %s172 = int_to_ptr.vmem [resolvable:$true] %s171
          %177 = dma.hbm_to_vmem [thread:$0]  %s170, 128, %s172, [#allocation4], 64, 64, 4
        $region16: #{tpu_custom_call.1} parent=11 // pred_fallthru
          _
      $region12: #{tpu_custom_call.1} parent=5 // pred_fallthru
        _
      %p178 = scmp.lt.s32.totalorder %s16, 2
      // Predicated region
      $region17: #{tpu_custom_call.1} parent=5 // pred_check
        %p179 = pneg %p178
      $region18: #{tpu_custom_call.1} parent=5 // pred_check_branch
        %181 = sbr.rel (%p179) target = $region20
      $region19: #{tpu_custom_call.1} parent=5 // pred_region
        // Predicated region
        $region21: #{tpu_custom_call.1} parent=19 // pred_check
          %p182 = pneg %p85
        $region22: #{tpu_custom_call.1} parent=19 // pred_check_branch
          %184 = sbr.rel (%p182) target = $region24
        $region23: #{tpu_custom_call.1} parent=19 // pred_region
          %s185 = sand.u32 %s16, 1
          %s186 = scalar_lea.sflag [#allocation7], %s185
          %s187 = sand.u32 %s75, 1
          %s188 = smul.addr %s187, 64
          %s189 = scalar_lea.vmem [#allocation6], %s188
          %s190 = smul.u32 16, %s25
          %192 = vsyncadd %s186, 0
          %s193 = smul.addr %s190, 2
          %s194 = sadd.s32 %s24, %s193
          %s195 = smul.addr %s194, 4
          %s196 = scalar_lea.hbm %s1, %s195
          %s197 = sshll.u32 %s196, 4
          %s198 = int_to_ptr.hbm [resolvable:$true] %s197
          %s199 = sshll.u32 %s189, 4
          %s200 = int_to_ptr.vmem [resolvable:$true] %s199
          %205 = dma.hbm_to_vmem [thread:$0]  %s198, 1024, %s200, %s186, 128, 64, 4
        $region24: #{tpu_custom_call.1} parent=19 // pred_fallthru
          _
        // Predicated region
        $region25: #{tpu_custom_call.1} parent=19 // pred_check
          %p206 = pneg %p111
        $region26: #{tpu_custom_call.1} parent=19 // pred_check_branch
          %208 = sbr.rel (%p206) target = $region28
        $region27: #{tpu_custom_call.1} parent=19 // pred_region
          %s209 = sand.u32 %s16, 1
          %s210 = scalar_lea.sflag [#allocation7], %s209
          %s211 = sand.u32 %s101, 1
          %s212 = scalar_lea.vmem [#allocation8], %s211
          %214 = vsyncadd %s210, 0
          %s215 = scalar_lea.hbm %s2, %s24
          %s217 = sshll.u32 %s215, 4
          %s218 = int_to_ptr.hbm [resolvable:$true] %s217
          %s219 = sshll.u32 %s212, 4
          %s220 = int_to_ptr.vmem [resolvable:$true] %s219
          %222 = dma.hbm_to_vmem [thread:$0]  %s218, 16, %s220, %s210
        $region28: #{tpu_custom_call.1} parent=19 // pred_fallthru
          _
      $region20: #{tpu_custom_call.1} parent=5 // pred_fallthru
        _
      %p223 = scmp.le.s32.totalorder 1, %s16
      %p224 = scmp.lt.s32.totalorder %s16, 3
      %p225 = pnand %p223, %p224
      %p226 = pneg %p225
      // Predicated region
      $region29: #{tpu_custom_call.1} parent=5 // pred_check
        _
      $region30: #{tpu_custom_call.1} parent=5 // pred_check_branch
        %228 = sbr.rel (%p225) target = $region32
      $region31: #{tpu_custom_call.1} parent=5 // pred_region
        %s229 = ssub.s32 %s16, 1
        // Predicated region
        $region33: #{tpu_custom_call.1} parent=31 // pred_check
          %p230 = pneg %p63
        $region34: #{tpu_custom_call.1} parent=31 // pred_check_branch
          %232 = sbr.rel (%p230) target = $region36
        $region35: #{tpu_custom_call.1} parent=31 // pred_region
          %234 = dma.done [#allocation4], 128
        $region36: #{tpu_custom_call.1} parent=31 // pred_fallthru
          _
        %s235 = sand.u32 %s21, 1
        %s236 = scalar_lea.sflag [#allocation7], %s235
        %s237 = sand.u32 %s78, 1
        %s238 = smul.addr %s237, 64
        %s239 = scalar_lea.vmem [#allocation6], %s238
        // Predicated region
        $region37: #{tpu_custom_call.1} parent=31 // pred_check
          %p240 = pneg %p91
        $region38: #{tpu_custom_call.1} parent=31 // pred_check_branch
          %242 = sbr.rel (%p240) target = $region40
        $region39: #{tpu_custom_call.1} parent=31 // pred_region
          %244 = dma.done %s236, 1024
        $region40: #{tpu_custom_call.1} parent=31 // pred_fallthru
          _
        %s245 = sand.u32 %s21, 1
        %s246 = scalar_lea.sflag [#allocation7], %s245
        %s247 = sand.u32 %s104, 1
        %s248 = scalar_lea.vmem [#allocation8], %s247
        // Predicated region
        $region41: #{tpu_custom_call.1} parent=31 // pred_check
          %p249 = pneg %p117
        $region42: #{tpu_custom_call.1} parent=31 // pred_check_branch
          %251 = sbr.rel (%p249) target = $region44
        $region43: #{tpu_custom_call.1} parent=31 // pred_region
          %253 = dma.done %s246, 16
        $region44: #{tpu_custom_call.1} parent=31 // pred_fallthru
          _
        %p254 = pneg %p63
        %p255 = pneg %p60
        %s256 = sand.u32 %s21, 1
        %s257 = scalar_lea.sflag [#allocation7], %s256
        %s258 = sand.u32 %s78, 1
        %s259 = smul.addr %s258, 64
        %s260 = scalar_lea.vmem [#allocation6], %s259
        %p261 = pneg %p91
        %p262 = pneg %p88
        %s263 = sand.u32 %s21, 1
        %s264 = scalar_lea.sflag [#allocation7], %s263
        %s265 = sand.u32 %s104, 1
        %s266 = scalar_lea.vmem [#allocation8], %s265
        %p267 = pneg %p117
        %p268 = pneg %p114
        %p269 = pneg %p145
        %p270 = pneg %p142
        %s271 = sand.u32 %s132, 1
        %s272 = scalar_lea.sflag [#allocation5], %s271
        %s273 = sand.u32 %s132, 1
        %s274 = smul.addr %s273, 16
        %s275 = scalar_lea.vmem [#allocation9], %s274
        %s276 = smul.u32 2, %s26
        %s277 = smul.u32 16, %s28
        %s278 = smul.u32 2, %s26
        %p279 = scmp.eq.s32.totalorder %s28, 0
        // Predicated region
        $region45: #{tpu_custom_call.1} parent=31 // pred_check
          %p280 = pneg %p279
        $region46: #{tpu_custom_call.1} parent=31 // pred_check_branch
          %282 = sbr.rel (%p280) target = $region48
        $region47: #{tpu_custom_call.1} parent=31 // pred_region
          %283 = vst [vmem:[#allocation2] sm:$0xff] 0.0
          %284 = vst [vmem:[#allocation2 + $0x8] sm:$0xff] 0.0
        $region48: #{tpu_custom_call.1} parent=31 // pred_fallthru
          _
        %v285 = vld [vmem:[#allocation2] sm:$0xff]
        %v286 = vld [vmem:[#allocation2 + $0x8] sm:$0xff]
        %v287 = vld [vmem:[#allocation3] sm:$0xf]
        %v288 = vld [vmem:[#allocation3 + $0x4] sm:$0xf]
        %v289 = vld [vmem:[%s239] sm:$0xf]
        %v290 = vld [vmem:[%s239 + $0x4] sm:$0xf]
        %v291 = vld [vmem:[%s239 + $0x8] sm:$0xf]
        %v292 = vld [vmem:[%s239 + $0xc] sm:$0xf]
        %v293 = vld [vmem:[%s239 + $0x10] sm:$0xf]
        %v294 = vld [vmem:[%s239 + $0x14] sm:$0xf]
        %v295 = vld [vmem:[%s239 + $0x18] sm:$0xf]
        %v296 = vld [vmem:[%s239 + $0x1c] sm:$0xf]
        %v297 = vld [vmem:[%s239 + $0x20] sm:$0xf]
        %v298 = vld [vmem:[%s239 + $0x24] sm:$0xf]
        %v299 = vld [vmem:[%s239 + $0x28] sm:$0xf]
        %v300 = vld [vmem:[%s239 + $0x2c] sm:$0xf]
        %v301 = vld [vmem:[%s239 + $0x30] sm:$0xf]
        %v302 = vld [vmem:[%s239 + $0x34] sm:$0xf]
        %v303 = vld [vmem:[%s239 + $0x38] sm:$0xf]
        %v304 = vld [vmem:[%s239 + $0x3c] sm:$0xf]
        %v307 = vunpack.c.l.b16 %v287
        %v308 = vunpack.c.l.b16 %v288
        %v309 = vpack.c.b16 %v308, %v307
        %v327 = vunpack.c.l.b16 %v289
        %v328 = vunpack.c.l.b16 %v290
        %v329 = vunpack.c.l.b16 %v291
        %v330 = vunpack.c.l.b16 %v292
        %v331 = vunpack.c.l.b16 %v293
        %v332 = vunpack.c.l.b16 %v294
        %v333 = vunpack.c.l.b16 %v295
        %v334 = vunpack.c.l.b16 %v296
        %v335 = vunpack.c.l.b16 %v297
        %v336 = vunpack.c.l.b16 %v298
        %v337 = vunpack.c.l.b16 %v299
        %v338 = vunpack.c.l.b16 %v300
        %v339 = vunpack.c.l.b16 %v301
        %v340 = vunpack.c.l.b16 %v302
        %v341 = vunpack.c.l.b16 %v303
        %v342 = vunpack.c.l.b16 %v304
        %v343 = vpack.c.b16 %v328, %v327
        %v344 = vpack.c.b16 %v330, %v329
        %v345 = vpack.c.b16 %v332, %v331
        %v346 = vpack.c.b16 %v334, %v333
        %v347 = vpack.c.b16 %v336, %v335
        %v348 = vpack.c.b16 %v338, %v337
        %v349 = vpack.c.b16 %v340, %v339
        %v350 = vpack.c.b16 %v342, %v341
        %359 = vmatpush.bf16.msra.mxu0 %v350
        %360 = vmatpush.bf16.msra.mxu0 %v349
        %361 = vmatpush.bf16.msra.mxu0 %v348
        %362 = vmatpush.bf16.msra.mxu0 %v347
        %363 = vmatpush.bf16.msra.mxu0 %v346
        %364 = vmatpush.bf16.msra.mxu0 %v345
        %365 = vmatpush.bf16.msra.mxu0 %v344
        %366 = vmatpush.bf16.msra.mxu0 %v343
        %367 = vmatmul.bf16.gmra.mxu0 %v309
        %v368 = vpop.f32.mrf.mxu0
        %v369 = vadd.f32 0.0, %v368
        %v370 = vpop.f32.mrf.mxu0
        %v371 = vadd.f32 0.0, %v370
        %372 = vdwg.mxu0
        %v373 = vadd.f32 %v285, %v369
        %v374 = vadd.f32 %v286, %v371
        %375 = vst [vmem:[#allocation2] sm:$0xff] %v373
        %376 = vst [vmem:[#allocation2 + $0x8] sm:$0xff] %v374
        // Predicated region
        $region49: #{tpu_custom_call.1} parent=31 // pred_check
          %p377 = pneg %p279
        $region50: #{tpu_custom_call.1} parent=31 // pred_check_branch
          %379 = sbr.rel (%p377) target = $region52
        $region51: #{tpu_custom_call.1} parent=31 // pred_region
          %v380 = vld [vmem:[#allocation2] sm:$0xff]
          %v381 = vld [vmem:[#allocation2 + $0x8] sm:$0xff]
          %v382 = vld [vmem:[%s248] sm:$0x1]
          %v384 = vperm.slane %v382, 0
          %v386 = vadd.f32 %v380, %v384
          %v387 = vadd.f32 %v381, %v384
          %388 = vst [vmem:[%s275] sm:$0xff] %v386
          %389 = vst [vmem:[%s275 + $0x8] sm:$0xff] %v387
        $region52: #{tpu_custom_call.1} parent=31 // pred_fallthru
          _
        %s390 = sand.u32 %s132, 1
        %s391 = scalar_lea.sflag [#allocation5], %s390
        %s392 = sand.u32 %s132, 1
        %s393 = smul.addr %s392, 16
        %s394 = scalar_lea.vmem [#allocation9], %s393
        // Predicated region
        $region53: #{tpu_custom_call.1} parent=31 // pred_check
          %p395 = pneg %p142
        $region54: #{tpu_custom_call.1} parent=31 // pred_check_branch
          %397 = sbr.rel (%p395) target = $region56
        $region55: #{tpu_custom_call.1} parent=31 // pred_region
          %s398 = smul.u32 2, %s26
          %400 = vsyncadd %s391, 0
          %s401 = smul.addr %s398, 2
          %s402 = sadd.s32 %s27, %s401
          %s403 = smul.addr %s402, 8
          %s404 = scalar_lea.hbm %s3, %s403
          %s405 = sshll.u32 %s394, 4
          %s406 = int_to_ptr.vmem [resolvable:$true] %s405
          %s407 = sshll.u32 %s404, 4
          %s408 = int_to_ptr.hbm [resolvable:$true] %s407
          %413 = dma.vmem_to_hbm [thread:$0]  %s406, 256, %s408, %s391, 128, 256, 8
        $region56: #{tpu_custom_call.1} parent=31 // pred_fallthru
          _
      $region32: #{tpu_custom_call.1} parent=5 // pred_fallthru
        _
      %p414 = scmp.le.s32.totalorder 2, %s16
      // Predicated region
      $region57: #{tpu_custom_call.1} parent=5 // pred_check
        %p415 = pneg %p414
      $region58: #{tpu_custom_call.1} parent=5 // pred_check_branch
        %417 = sbr.rel (%p415) target = $region60
      $region59: #{tpu_custom_call.1} parent=5 // pred_region
        %s418 = ssub.s32 %s16, 2
        // Predicated region
        $region61: #{tpu_custom_call.1} parent=59 // pred_check
          %p419 = pneg %p148
        $region62: #{tpu_custom_call.1} parent=59 // pred_check_branch
          %421 = sbr.rel (%p419) target = $region64
        $region63: #{tpu_custom_call.1} parent=59 // pred_region
          %s422 = sand.u32 %s133, 1
          %s423 = scalar_lea.sflag [#allocation5], %s422
          %s424 = sand.u32 %s133, 1
          %s425 = smul.addr %s424, 16
          %s426 = scalar_lea.vmem [#allocation9], %s425
          %428 = dma.done %s423, 256
        $region64: #{tpu_custom_call.1} parent=59 // pred_fallthru
          _
      $region60: #{tpu_custom_call.1} parent=5 // pred_fallthru
        _
    $region6: #{tpu_custom_call.1} parent=1 // loop_footer
      %s20 = sadd.s32 1, %s16
    $region7: #{tpu_custom_call.1} parent=1 // loop_footer_branch
      %15 = sbr.rel target = $region3
    $region8: #{tpu_custom_call.1} parent=1 // loop_exit
      _
    %429 = vsyncpa [#allocation4], 1
    %s430 = scalar_lea.sflag [#allocation4], 1
    %431 = vsyncpa %s430, 1
    %432 = vsyncpa [#allocation7], 1
    %s433 = scalar_lea.sflag [#allocation7], 1
    %434 = vsyncpa %s433, 1
    %435 = vsyncpa [#allocation5], 1
    %s436 = scalar_lea.sflag [#allocation5], 1
    %437 = vsyncpa %s436, 1

</llo_original>
